<compile_context>
chip_gen: v6e
topology: v6e:2x2x1
jax: 0.10.0
libtpu: 0.0.40
codegen_flags: <defaults>
</compile_context>

<pallas_src>
import functools

import jax
import jax.numpy as jnp
from jax.experimental import pallas as pl
from jax.experimental.pallas import tpu as pltpu


def split_image_to_patches_jax(x, patch_size):
    """Matches PyTorch split_image_to_patches + reshape(b, N, -1) ordering."""
    b, c, h, w = x.shape
    nh, nw = h // patch_size, w // patch_size
    x = x.reshape(b, c, nh, patch_size, nw, patch_size)
    x = jnp.transpose(x, (0, 2, 4, 1, 3, 5))            # (b, nh, nw, c, ps, ps)
    return x.reshape(b, nh * nw, c * patch_size * patch_size)


def vit_embed_kernel(patches_ref, w_ref, tok0_ref, pos_ref, o_ref):
    # patches_ref: (B*N, P)  bf16      w_ref:   (P, Epad)   bf16
    # tok0_ref:    (1, Epad) f32       pos_ref: (N, Epad)   f32  (= pos[1:] + bias)
    # o_ref:       (B, N+1, Epad) f32
    B, tokens, Ep = o_ref.shape
    N = tokens - 1
    emb = jnp.dot(patches_ref[...], w_ref[...],
                  preferred_element_type=jnp.float32)            # (B*N, Epad) f32
    emb = emb.reshape(B, N, Ep) + pos_ref[...][None, :, :]       # + (pos + bias)
    # Two direct stores instead of a concatenate:
    o_ref[:, 1:, :] = emb                                         # patch tokens
    o_ref[:, 0:1, :] = jnp.broadcast_to(tok0_ref[...][None, :, :],
                                        (B, 1, Ep))               # cls token row


@functools.partial(jax.jit, static_argnames=("patch_size",))
def vit_forward(x, w_emb, b_emb, cls_token, pos_embedding, patch_size):
    """x: (B, C, H, W) float32; returns (B, N+1, E) float32."""
    B, C, H, W = x.shape
    N = (H // patch_size) * (W // patch_size)
    P = C * patch_size * patch_size
    E = w_emb.shape[1]
    E_pad = ((E + 127) // 128) * 128                  # lane-dense output width

    # TODO(synk): patch extraction (reshape+transpose) stays in XLA; for large
    # images it could be fused into the kernel with manual DMAs over NHWC input.
    patches = split_image_to_patches_jax(x, patch_size)               # (B, N, P)
    patches_bf16 = patches.reshape(B * N, P).astype(jnp.bfloat16)

    # Weight padded to Epad lanes, bf16 for the MXU.
    w_pad = jnp.zeros((P, E_pad), jnp.bfloat16).at[:, :E].set(
        w_emb.astype(jnp.bfloat16))

    # Fold bias into pos rows 1..N and cls into pos row 0 (f32, lane-padded).
    pos = pos_embedding.reshape(N + 1, E)
    pos_patch = jnp.zeros((N, E_pad), jnp.float32).at[:, :E].set(
        pos[1:] + b_emb[None, :])
    tok0 = jnp.zeros((1, E_pad), jnp.float32).at[:, :E].set(
        cls_token.reshape(1, E) + pos[0:1])

    out_pad = pl.pallas_call(
        vit_embed_kernel,
        out_shape=jax.ShapeDtypeStruct((B, N + 1, E_pad), jnp.float32),
        in_specs=[
            pl.BlockSpec(memory_space=pltpu.MemorySpace.VMEM),   # patches
            pl.BlockSpec(memory_space=pltpu.MemorySpace.VMEM),   # weight
            pl.BlockSpec(memory_space=pltpu.MemorySpace.VMEM),   # cls + pos[0]
            pl.BlockSpec(memory_space=pltpu.MemorySpace.VMEM),   # pos[1:] + bias
        ],
        out_specs=pl.BlockSpec(memory_space=pltpu.MemorySpace.VMEM),
    )(patches_bf16, w_pad, tok0, pos_patch)

    return out_pad[..., :E]


def vit_forward_ref(x, w_emb, b_emb, cls_token, pos_embedding, patch_size):
    """Pure-JAX reference with matching bf16-matmul / f32-accumulate numerics."""
    B = x.shape[0]
    E = w_emb.shape[1]
    patches = split_image_to_patches_jax(x, patch_size)
    emb = jnp.dot(patches.astype(jnp.bfloat16), w_emb.astype(jnp.bfloat16),
                  preferred_element_type=jnp.float32) + b_emb[None, None, :]
    cls = jnp.broadcast_to(cls_token.reshape(1, 1, E), (B, 1, E))
    tokens = jnp.concatenate([cls, emb], axis=1)
    return tokens + pos_embedding.reshape(1, -1, E)


if __name__ == "__main__":
    # Small config consistent with the module: image 16x16, RGB (C=3 is fixed by
    # nn.Linear(patch_size*patch_size*3, embed_dim)), patch 4 -> 16 patches.
    image_size = 16
    patch_size = 4
    embed_dim = 32
    B, C = 2, 3
    N = (image_size // patch_size) ** 2          # 16
    P = C * patch_size * patch_size              # 48

    key = jax.random.PRNGKey(0)
    kx, kw, kb, kc, kp = jax.random.split(key, 5)
    x = jax.random.normal(kx, (B, C, image_size, image_size), dtype=jnp.float32)
    # linear_emb weight stored as (in, out) so the kernel does patches @ W + b.
    w_emb = jax.random.normal(kw, (P, embed_dim), dtype=jnp.float32) * 0.05
    b_emb = jax.random.normal(kb, (embed_dim,), dtype=jnp.float32) * 0.05
    cls_token = jax.random.normal(kc, (1, 1, embed_dim), dtype=jnp.float32) * 0.02
    pos_embedding = jax.random.normal(kp, (1, N + 1, embed_dim), dtype=jnp.float32) * 0.02
    # NOTE: PyTorch initializes cls_token / pos_embedding to zeros; random values
    # are used here to exercise the same computation nontrivially.

    out = vit_forward(x, w_emb, b_emb, cls_token, pos_embedding,
                      patch_size=patch_size)
    out = jax.block_until_ready(out)

    ref = vit_forward_ref(x, w_emb, b_emb, cls_token, pos_embedding, patch_size)
    assert out.shape == (B, N + 1, embed_dim)
    assert jnp.allclose(out, ref, atol=1e-4, rtol=1e-4), "mismatch vs JAX reference"

    # TODO(synk): ViTBlock / mlp_head / dropout are defined in __init__ but never
    # invoked in ViT.forward, so they are intentionally not implemented here.
    print("KERNEL_OK")
</pallas_src>

<mosaic_0001>
module attributes {stable_mosaic.version = 11 : i64} {
  func.func @vit_embed_kernel(%arg0: memref<32x48xbf16, #tpu.memory_space<vmem>>, %arg1: memref<48x128xbf16, #tpu.memory_space<vmem>>, %arg2: memref<1x128xf32, #tpu.memory_space<vmem>>, %arg3: memref<16x128xf32, #tpu.memory_space<vmem>>, %arg4: memref<2x17x128xf32, #tpu.memory_space<vmem>>) attributes {dimension_semantics = [], scalar_prefetch = 0 : i64, scratch_operands = 0 : i64, tpu.core_type = #tpu.core_type<tc>} {
    %c0 = arith.constant 0 : index
    %c0_0 = arith.constant 0 : index
    %0 = vector.load %arg0[%c0, %c0_0] : memref<32x48xbf16, #tpu.memory_space<vmem>>, vector<32x48xbf16>
    %c0_1 = arith.constant 0 : index
    %c0_2 = arith.constant 0 : index
    %1 = vector.load %arg1[%c0_1, %c0_2] : memref<48x128xbf16, #tpu.memory_space<vmem>>, vector<48x128xbf16>
    %cst = arith.constant dense<0.000000e+00> : vector<32x128xf32>
    %2 = tpu.matmul %0, %1, %cst {dimension_numbers = #tpu.dot_dimension_numbers<[1], [0], [0], [1], [0, 0, 1, 1], [], []>} : vector<32x48xbf16>, vector<48x128xbf16>, vector<32x128xf32> -> vector<32x128xf32>
    %3 = vector.shape_cast %2 : vector<32x128xf32> to vector<2x16x128xf32>
    %c0_3 = arith.constant 0 : index
    %c0_4 = arith.constant 0 : index
    %4 = vector.load %arg3[%c0_3, %c0_4] : memref<16x128xf32, #tpu.memory_space<vmem>>, vector<16x128xf32>
    %5 = vector.shape_cast %4 : vector<16x128xf32> to vector<1x16x128xf32>
    %6 = vector.broadcast %5 : vector<1x16x128xf32> to vector<2x16x128xf32>
    %7 = arith.addf %3, %6 : vector<2x16x128xf32>
    %c0_5 = arith.constant 0 : index
    %c1 = arith.constant 1 : index
    %c0_6 = arith.constant 0 : index
    %8 = vector.load %arg4[%c0_5, %c1, %c0_6] : memref<2x17x128xf32, #tpu.memory_space<vmem>>, vector<2x16x128xf32>
    tpu.vector_store %arg4[%c0_5, %c1, %c0_6], %7 {strides = array<i32>} : memref<2x17x128xf32, #tpu.memory_space<vmem>>, vector<2x16x128xf32>,
    %c0_7 = arith.constant 0 : index
    %c0_8 = arith.constant 0 : index
    %9 = vector.load %arg2[%c0_7, %c0_8] : memref<1x128xf32, #tpu.memory_space<vmem>>, vector<1x128xf32>
    %10 = vector.shape_cast %9 : vector<1x128xf32> to vector<1x1x128xf32>
    %11 = vector.shape_cast %10 : vector<1x1x128xf32> to vector<1x1x128xf32>
    %12 = vector.broadcast %11 : vector<1x1x128xf32> to vector<2x1x128xf32>
    %c0_9 = arith.constant 0 : index
    %c0_10 = arith.constant 0 : index
    %c0_11 = arith.constant 0 : index
    %13 = vector.load %arg4[%c0_9, %c0_10, %c0_11] : memref<2x17x128xf32, #tpu.memory_space<vmem>>, vector<2x1x128xf32>
    tpu.vector_store %arg4[%c0_9, %c0_10, %c0_11], %12 {strides = array<i32>} : memref<2x17x128xf32, #tpu.memory_space<vmem>>, vector<2x1x128xf32>,
    return
  }
}

</mosaic_0001>

<llo_original>
// kernel: vit_forward.1
$region0: #{vit_forward.1}
  #allocation0 [shape = 'u32[]', space=smem, size = 0x4, offset = 0x4, fixed_abs, tag = 'smem constant byte address 0x4 - core index']
  #allocation1 [shape = 'u32[144,128]{1,0:T(1,128)}', space=vmem, size = 0x12000, scoped, tag = 'internal scratch']
  %s0 = inlined_call_operand.vmem [shape: bf16[32,48], index: 0, kind: input, shape index: {}]
  %s1 = inlined_call_operand.vmem [shape: bf16[48,128], index: 1, kind: input, shape index: {}]
  %s2 = inlined_call_operand.vmem [shape: f32[1,128], index: 2, kind: input, shape index: {}]
  %s3 = inlined_call_operand.vmem [shape: f32[16,128], index: 3, kind: input, shape index: {}]
  %s4 = inlined_call_operand.vmem [shape: f32[2,17,128], index: 4, kind: output, shape index: {}]
  %s5 = sld [smem:[#allocation0]]
  $region26: #{vit_forward.1} parent=0
    _
  %s7 = ssub.s32 1, %s5
  %s8 = scalar_select 0, %s7, %s5
  // Predicated region
  $region2: #{vit_forward.1} parent=0 // pred_check
    _
  $region3: #{vit_forward.1} parent=0 // pred_check_branch
    %10 = sbr.rel (0) target = $region5
  $region4: #{vit_forward.1} parent=0 // pred_region
    _
  $region5: #{vit_forward.1} parent=0 // pred_fallthru
    _
  // Predicated region
  $region6: #{vit_forward.1} parent=0 // pred_check
    _
  $region7: #{vit_forward.1} parent=0 // pred_check_branch
    %12 = sbr.rel (0) target = $region9
  $region8: #{vit_forward.1} parent=0 // pred_region
    _
  $region9: #{vit_forward.1} parent=0 // pred_fallthru
    _
  // Predicated region
  $region10: #{vit_forward.1} parent=0 // pred_check
    _
  $region11: #{vit_forward.1} parent=0 // pred_check_branch
    %14 = sbr.rel (0) target = $region13
  $region12: #{vit_forward.1} parent=0 // pred_region
    _
  $region13: #{vit_forward.1} parent=0 // pred_fallthru
    _
  // Predicated region
  $region14: #{vit_forward.1} parent=0 // pred_check
    _
  $region15: #{vit_forward.1} parent=0 // pred_check_branch
    %16 = sbr.rel (0) target = $region17
  $region16: #{vit_forward.1} parent=0 // pred_region
    _
  $region17: #{vit_forward.1} parent=0 // pred_fallthru
    _
  %v18 = vld [vmem:[%s0] sm:$0xf]
  %v19 = vld [vmem:[%s0 + $0x4] sm:$0xf]
  %v20 = vld [vmem:[%s0 + $0x8] sm:$0xf]
  %v21 = vld [vmem:[%s0 + $0xc] sm:$0xf]
  %v22 = vld [vmem:[%s1] sm:$0xf]
  %v23 = vld [vmem:[%s1 + $0x4] sm:$0xf]
  %v24 = vld [vmem:[%s1 + $0x8] sm:$0xf]
  %v25 = vld [vmem:[%s1 + $0xc] sm:$0xf]
  %v26 = vld [vmem:[%s1 + $0x10] sm:$0xf]
  %v27 = vld [vmem:[%s1 + $0x14] sm:$0xf]
  %v32 = vunpack.c.l.b16 %v18
  %v33 = vunpack.c.l.b16 %v19
  %v34 = vunpack.c.l.b16 %v20
  %v35 = vunpack.c.l.b16 %v21
  %v36 = vpack.c.b16 %v33, %v32
  %v37 = vpack.c.b16 %v35, %v34
  %v44 = vunpack.c.l.b16 %v22
  %v45 = vunpack.c.l.b16 %v23
  %v46 = vunpack.c.l.b16 %v24
  %v47 = vunpack.c.l.b16 %v25
  %v48 = vunpack.c.l.b16 %v26
  %v49 = vunpack.c.l.b16 %v27
  %v50 = vpack.c.b16 %v45, %v44
  %v51 = vpack.c.b16 %v47, %v46
  %v52 = vpack.c.b16 %v49, %v48
  %vm56 = vcmask 392192
  %v58 = vsel %vm56, %v36, 0
  %v61 = vsel %vm56, %v37, 0
  %63 = vmatprep.subr.bf16.mxu0 0
  %64 = vmatpush1.bf16.msra.mxu0 0
  %65 = vmatprep.subr.bf16.mxu0 0
  %66 = vmatpush1.bf16.msra.mxu0 0
  %67 = vmatprep.subr.bf16.mxu0 0
  %68 = vmatpush1.bf16.msra.mxu0 0
  %69 = vmatprep.subr.bf16.mxu0 0
  %70 = vmatpush1.bf16.msra.mxu0 0
  %71 = vmatprep.subr.bf16.mxu0 0
  %72 = vmatpush1.bf16.msra.mxu0 0
  %73 = vmatprep.subr.bf16.mxu0 0
  %74 = vmatpush1.bf16.msra.mxu0 %v52
  %75 = vmatprep.subr.bf16.mxu0 0
  %76 = vmatpush1.bf16.msra.mxu0 %v51
  %77 = vmatprep.subr.bf16.mxu0 0
  %78 = vmatpush1.bf16.msra.mxu0 %v50
  %79 = vmatprep.subr.bf16.mxu0 0
  %80 = vmatpush2.bf16.msra.mxu0 0
  %81 = vmatprep.subr.bf16.mxu0 0
  %82 = vmatpush2.bf16.msra.mxu0 0
  %83 = vmatprep.subr.bf16.mxu0 0
  %84 = vmatpush2.bf16.msra.mxu0 0
  %85 = vmatprep.subr.bf16.mxu0 0
  %86 = vmatpush2.bf16.msra.mxu0 0
  %87 = vmatprep.subr.bf16.mxu0 0
  %88 = vmatpush2.bf16.msra.mxu0 0
  %89 = vmatprep.subr.bf16.mxu0 0
  %90 = vmatpush2.bf16.msra.mxu0 0
  %91 = vmatprep.subr.bf16.mxu0 0
  %92 = vmatpush2.bf16.msra.mxu0 0
  %93 = vmatprep.subr.bf16.mxu0 0
  %94 = vmatpush2.bf16.msra.mxu0 0
  %95 = vmatprep.mubr.bf16.mxu0 0
  %96 = vmatmul.mubr.bf16.gmra.mxu0 %v58
  %v97 = vpop.f32.mrf.mxu0
  %v98 = vadd.f32 0.0, %v97
  %v99 = vpop.f32.mrf.mxu0
  %v100 = vpop.f32.mrf.mxu0
  %v101 = vadd.f32 0.0, %v100
  %v102 = vpop.f32.mrf.mxu0
  %103 = vmatprep.mubr.bf16.mxu0 0
  %104 = vmatmul.mubr.bf16.gmra.mxu0 %v61
  %v105 = vpop.f32.mrf.mxu0
  %v106 = vadd.f32 0.0, %v105
  %v107 = vpop.f32.mrf.mxu0
  %v108 = vpop.f32.mrf.mxu0
  %v109 = vadd.f32 0.0, %v108
  %v110 = vpop.f32.mrf.mxu0
  %111 = vdwg.mxu0
  %v112 = vld [vmem:[%s3] sm:$0xff]
  %v113 = vld [vmem:[%s3 + $0x8] sm:$0xff]
  %v114 = vadd.f32 %v98, %v112
  %v115 = vadd.f32 %v101, %v113
  %v116 = vadd.f32 %v106, %v112
  %v117 = vadd.f32 %v109, %v113
  %118 = vst [vmem:[%s4 + $0x1] sm:$0xff] %v114
  %119 = vst [vmem:[%s4 + $0x9] sm:$0xff] %v115
  %120 = vst [vmem:[%s4 + $0x19] sm:$0xff] %v116
  %121 = vst [vmem:[%s4 + $0x21] sm:$0xff] %v117
  %v122 = vld [vmem:[%s2] sm:$0x1]
  %123 = vst [vmem:[%s4] sm:$0x1] %v122
  %124 = vst [vmem:[%s4 + $0x18] sm:$0x1] %v122
  // Predicated region
  $region18: #{vit_forward.1} parent=0 // pred_check
    _
  $region19: #{vit_forward.1} parent=0 // pred_check_branch
    %126 = sbr.rel (0) target = $region21
  $region20: #{vit_forward.1} parent=0 // pred_region
    _
  $region21: #{vit_forward.1} parent=0 // pred_fallthru
    _
  // Predicated region
  $region22: #{vit_forward.1} parent=0 // pred_check
    _
  $region23: #{vit_forward.1} parent=0 // pred_check_branch
    %128 = sbr.rel (0) target = $region25
  $region24: #{vit_forward.1} parent=0 // pred_region
    _
  $region25: #{vit_forward.1} parent=0 // pred_fallthru
    _

</llo_original>
